<compile_context>
chip_gen: v7x
topology: tpu7x:2x2x1
jax: 0.10.0
libtpu: 0.0.40
codegen_flags: <defaults>
</compile_context>

<pallas_src>
import jax
import jax.numpy as jnp
from jax.experimental import pallas as pl
from jax.experimental.pallas import tpu as pltpu


def gru_seq_kernel(x_ref, h0_ref, w_ref, whc_ref, b_ref, out_ref, h_scr):
    """One timestep of the GRU, with the hidden state carried in VMEM scratch.

    x_ref:   (1, B, W)   current timestep's input block
    h0_ref:  (B, H)      initial hidden state (resident; read only at t == 0)
    w_ref:   (W+H, 3H)   packed gate weights [r | z | c]; h->c block is zero
    whc_ref: (H, H)      recurrent candidate weight
    b_ref:   (1, 3H)     packed biases [r | z | c] (f32)
    out_ref: (1, B, H)   hidden state written for this timestep
    h_scr:   (B, H) f32  hidden-state carry across grid steps
    """
    t = pl.program_id(0)
    H = out_ref.shape[-1]

    @pl.when(t == 0)
    def _():
        h_scr[...] = h0_ref[...].astype(jnp.float32)

    h = h_scr[...]                                    # (B, H) f32
    x = x_ref[0].astype(jnp.float32)                  # (B, W) f32

    # Fused gate dot: [x | h] @ (W+H, 3H) -> (B, 3H), f32 accumulation.
    xh = jnp.concatenate([x, h], axis=1).astype(w_ref.dtype)
    gates = (
        jnp.dot(xh, w_ref[...], preferred_element_type=jnp.float32)
        + b_ref[...]
    )                                                  # (B, 3H)

    # One sigmoid over the packed r|z block; keep (1 - rz) packed too.
    rz = jax.nn.sigmoid(gates[:, : 2 * H])             # (B, 2H)
    one_minus_rz = 1.0 - rz
    r_compl = one_minus_rz[:, :H]                      # (1 - r)
    z = rz[:, H: 2 * H]
    z_compl = one_minus_rz[:, H: 2 * H]                # (1 - z)

    # candidate: relu(x @ Wc_x + ((1 - r) * h) @ Wc_h + b_c)
    h_gated = (r_compl * h).astype(whc_ref.dtype)
    c_pre = gates[:, 2 * H:] + jnp.dot(
        h_gated, whc_ref[...], preferred_element_type=jnp.float32
    )
    h_cand = jnp.maximum(c_pre, 0.0)

    # final blend + relu; update carry and write this step's output.
    h_new = jnp.maximum(h_cand * z_compl + z * h, 0.0)
    h_scr[...] = h_new
    out_ref[0] = h_new.astype(out_ref.dtype)


def pack_gru_params(params, word_embed_dim, compute_dtype=jnp.float32):
    """One-time weight prep (hoisted out of the per-step call path).

    PyTorch Linear weight is (H, W+H) with y = inp @ w.T + b.  We transpose,
    split into x-part / h-part, and pack one gate weight:
        w_gates = [ wr_x | wz_x | wc_x ]      (W rows)
                  [ wr_h | wz_h |  0   ]      (H rows)   -> (W+H, 3H)
    The h->candidate block is zero because the candidate's recurrent input is
    the gated (1-r)*h, handled by the separate wh_c dot.
        wh_c = wc_h                        -> (H, H)
        b    = [br | bz | bc]              -> (1, 3H)  (kept in f32)
    """
    W = word_embed_dim

    def split(w):
        wt = w.T  # (W + H, H)
        return wt[:W, :], wt[W:, :]

    wr_x, wr_h = split(params["w_reset"])
    wz_x, wz_h = split(params["w_update"])
    wc_x, wc_h = split(params["w_cand"])

    top = jnp.concatenate([wr_x, wz_x, wc_x], axis=1)                    # (W, 3H)
    bot = jnp.concatenate([wr_h, wz_h, jnp.zeros_like(wc_h)], axis=1)    # (H, 3H)
    w_gates = jnp.concatenate([top, bot], axis=0).astype(compute_dtype)  # (W+H, 3H)
    wh_c = wc_h.astype(compute_dtype)                                    # (H, H)
    b = jnp.concatenate(
        [params["b_reset"], params["b_update"], params["b_cand"]]
    ).reshape(1, -1).astype(jnp.float32)                                 # (1, 3H)
    return {"w_gates": w_gates, "wh_c": wh_c, "b": b}


def gru_sequence_pallas(x_seq, h0, packed):
    """Run the GRU cell over a sequence in one pallas_call.

    x_seq: (T, B, W) f32, h0: (B, H) f32.  Returns (T, B, H) hidden states.
    Weights/bias come from pack_gru_params (already in their MXU dtype).
    """
    T, B, W = x_seq.shape
    H = h0.shape[1]
    WH, H3 = packed["w_gates"].shape

    def resident(shape):
        return pl.BlockSpec(shape, lambda t: (0,) * len(shape))

    return pl.pallas_call(
        gru_seq_kernel,
        out_shape=jax.ShapeDtypeStruct((T, B, H), h0.dtype),
        grid=(T,),
        in_specs=[
            pl.BlockSpec((1, B, W), lambda t: (t, 0, 0)),   # x: streamed per step
            resident((B, H)),                               # h0: DMA'd once
            resident((WH, H3)),                             # packed gate weights
            resident((H, H)),                               # recurrent candidate weight
            resident((1, H3)),                              # packed bias
        ],
        out_specs=pl.BlockSpec((1, B, H), lambda t: (t, 0, 0)),
        scratch_shapes=[pltpu.VMEM((B, H), jnp.float32)],   # hidden-state carry
        compiler_params=pltpu.CompilerParams(
            dimension_semantics=("arbitrary",)              # sequential T loop
        ),
    )(x_seq, h0, packed["w_gates"], packed["wh_c"], packed["b"])


def gru_cell_pallas(x, hprev, packed):
    """Single-step forward matching GruCell.forward (T=1 case of the kernel)."""
    return gru_sequence_pallas(x[None], hprev, packed)[0]


# ----------------------------- pure-JAX reference ---------------------------

def gru_cell_reference(x, hprev, params):
    cat_xh = jnp.concatenate([x, hprev], axis=1)
    r = jax.nn.sigmoid(cat_xh @ params["w_reset"].T + params["b_reset"])
    z = jax.nn.sigmoid(cat_xh @ params["w_update"].T + params["b_update"])
    cat_xc = jnp.concatenate([x, (1.0 - r) * hprev], axis=1)
    hc = jax.nn.relu(cat_xc @ params["w_cand"].T + params["b_cand"])
    return jax.nn.relu(hc * (1.0 - z) + z * hprev)


def gru_sequence_reference(x_seq, h0, params):
    def step(h, x):
        h_new = gru_cell_reference(x, h, params)
        return h_new, h_new

    _, hs = jax.lax.scan(step, h0, x_seq)
    return hs


if __name__ == "__main__":
    word_embed_dim = 32
    hidden_embed_dim = 32
    batch = 8
    seq_len = 16

    key = jax.random.PRNGKey(0)
    keys = jax.random.split(key, 8)

    in_features = word_embed_dim + hidden_embed_dim
    bound = 1.0 / jnp.sqrt(in_features)

    def uniform(k, shape):
        return jax.random.uniform(k, shape, jnp.float32, -bound, bound)

    params = {
        "w_reset": uniform(keys[0], (hidden_embed_dim, in_features)),
        "b_reset": uniform(keys[1], (hidden_embed_dim,)),
        "w_update": uniform(keys[2], (hidden_embed_dim, in_features)),
        "b_update": uniform(keys[3], (hidden_embed_dim,)),
        "w_cand": uniform(keys[4], (hidden_embed_dim, in_features)),
        "b_cand": uniform(keys[5], (hidden_embed_dim,)),
    }

    x_seq = jax.random.normal(keys[6], (seq_len, batch, word_embed_dim), jnp.float32)
    h0 = jax.random.normal(keys[7], (batch, hidden_embed_dim), jnp.float32)

    # --- single-step forward (exact module semantics), f32 weights ----------
    packed_f32 = pack_gru_params(params, word_embed_dim, compute_dtype=jnp.float32)
    out_step = jax.block_until_ready(gru_cell_pallas(x_seq[0], h0, packed_f32))
    ref_step = gru_cell_reference(x_seq[0], h0, params)
    assert out_step.shape == (batch, hidden_embed_dim)
    assert jnp.allclose(out_step, ref_step, atol=1e-5, rtol=1e-5), "f32 single-step mismatch"

    # --- full sequence in one pallas_call, f32 weights -----------------------
    out_seq = jax.block_until_ready(gru_sequence_pallas(x_seq, h0, packed_f32))
    ref_seq = gru_sequence_reference(x_seq, h0, params)
    assert out_seq.shape == (seq_len, batch, hidden_embed_dim)
    assert jnp.allclose(out_seq, ref_seq, atol=1e-5, rtol=1e-5), "f32 sequence mismatch"

    # --- bf16 MXU operands (v6e/v7x-friendly); f32 carry / elementwise -------
    packed_bf16 = pack_gru_params(params, word_embed_dim, compute_dtype=jnp.bfloat16)
    out_seq_bf16 = jax.block_until_ready(gru_sequence_pallas(x_seq, h0, packed_bf16))
    assert out_seq_bf16.shape == (seq_len, batch, hidden_embed_dim)
    assert jnp.allclose(out_seq_bf16, ref_seq, atol=5e-2, rtol=5e-2), "bf16 sequence mismatch"

    print("KERNEL_OK")
</pallas_src>

<mosaic_0001>
module attributes {stable_mosaic.version = 11 : i64} {
  func.func @gru_seq_kernel(%arg0: i32, %arg1: memref<1x8x32xf32, #tpu.memory_space<vmem>>, %arg2: memref<8x32xf32, #tpu.memory_space<vmem>>, %arg3: memref<64x96xf32, #tpu.memory_space<vmem>>, %arg4: memref<32x32xf32, #tpu.memory_space<vmem>>, %arg5: memref<1x96xf32, #tpu.memory_space<vmem>>, %arg6: memref<1x8x32xf32, #tpu.memory_space<vmem>>, %arg7: memref<8x32xf32, #tpu.memory_space<vmem>>) attributes {dimension_semantics = [#tpu.dimension_semantics<arbitrary>], iteration_bounds = array<i64: 1>, scalar_prefetch = 0 : i64, scratch_operands = 1 : i64, tpu.core_type = #tpu.core_type<tc>, window_params = [{transform_indices = @transform_0, window_bounds = array<i64: 1, 8, 32>}, {pipeline_mode = #tpu.pipeline_mode<synchronous>, transform_indices = @transform_1, window_bounds = array<i64: 8, 32>}, {pipeline_mode = #tpu.pipeline_mode<synchronous>, transform_indices = @transform_2, window_bounds = array<i64: 64, 96>}, {pipeline_mode = #tpu.pipeline_mode<synchronous>, transform_indices = @transform_3, window_bounds = array<i64: 32, 32>}, {pipeline_mode = #tpu.pipeline_mode<synchronous>, transform_indices = @transform_4, window_bounds = array<i64: 1, 96>}, {transform_indices = @transform_5, window_bounds = array<i64: 1, 8, 32>}]} {
    %c0_i32 = arith.constant 0 : i32
    %0 = arith.cmpi eq, %arg0, %c0_i32 : i32
    %1 = arith.extui %0 : i1 to i32
    %c0_i32_0 = arith.constant 0 : i32
    %2 = arith.cmpi ne, %1, %c0_i32_0 : i32
    scf.if %2 {
      %c0_21 = arith.constant 0 : index
      %c0_22 = arith.constant 0 : index
      %39 = vector.load %arg2[%c0_21, %c0_22] : memref<8x32xf32, #tpu.memory_space<vmem>>, vector<8x32xf32>
      %c0_23 = arith.constant 0 : index
      %c0_24 = arith.constant 0 : index
      %40 = vector.load %arg7[%c0_23, %c0_24] : memref<8x32xf32, #tpu.memory_space<vmem>>, vector<8x32xf32>
      tpu.vector_store %arg7[%c0_23, %c0_24], %39 {strides = array<i32>} : memref<8x32xf32, #tpu.memory_space<vmem>>, vector<8x32xf32>,
    } else {
    }
    %c0 = arith.constant 0 : index
    %c0_1 = arith.constant 0 : index
    %3 = vector.load %arg7[%c0, %c0_1] : memref<8x32xf32, #tpu.memory_space<vmem>>, vector<8x32xf32>
    %c0_2 = arith.constant 0 : index
    %c0_3 = arith.constant 0 : index
    %c0_4 = arith.constant 0 : index
    %4 = vector.load %arg1[%c0_2, %c0_3, %c0_4] : memref<1x8x32xf32, #tpu.memory_space<vmem>>, vector<1x8x32xf32>
    %5 = vector.shape_cast %4 : vector<1x8x32xf32> to vector<8x32xf32>
    %6 = tpu.concatenate %5, %3 in 1 : vector<8x32xf32>, vector<8x32xf32> -> vector<8x64xf32>
    %c0_5 = arith.constant 0 : index
    %c0_6 = arith.constant 0 : index
    %7 = vector.load %arg3[%c0_5, %c0_6] : memref<64x96xf32, #tpu.memory_space<vmem>>, vector<64x96xf32>
    %cst = arith.constant dense<0.000000e+00> : vector<8x96xf32>
    %8 = tpu.matmul %6, %7, %cst {dimension_numbers = #tpu.dot_dimension_numbers<[1], [0], [0], [1], [0, 0, 1, 1], [], []>} : vector<8x64xf32>, vector<64x96xf32>, vector<8x96xf32> -> vector<8x96xf32>
    %c0_7 = arith.constant 0 : index
    %c0_8 = arith.constant 0 : index
    %9 = vector.load %arg5[%c0_7, %c0_8] : memref<1x96xf32, #tpu.memory_space<vmem>>, vector<1x96xf32>
    %10 = vector.broadcast %9 : vector<1x96xf32> to vector<8x96xf32>
    %11 = arith.addf %8, %10 : vector<8x96xf32>
    %12 = vector.extract_strided_slice %11 {offsets = [0, 0], sizes = [8, 64], strides = [1, 1]} : vector<8x96xf32> to vector<8x64xf32>
    %13 = arith.negf %12 : vector<8x64xf32>
    %14 = math.exp %13 : vector<8x64xf32>
    %cst_9 = arith.constant 1.000000e+00 : f32
    %15 = vector.broadcast %cst_9 : f32 to vector<8x64xf32>
    %16 = arith.addf %15, %14 : vector<8x64xf32>
    %17 = arith.divf %15, %16 : vector<8x64xf32>
    %cst_10 = arith.constant 1.000000e+00 : f32
    %18 = vector.broadcast %cst_10 : f32 to vector<8x64xf32>
    %19 = arith.subf %18, %17 : vector<8x64xf32>
    %20 = vector.extract_strided_slice %19 {offsets = [0, 0], sizes = [8, 32], strides = [1, 1]} : vector<8x64xf32> to vector<8x32xf32>
    %21 = vector.extract_strided_slice %17 {offsets = [0, 32], sizes = [8, 32], strides = [1, 1]} : vector<8x64xf32> to vector<8x32xf32>
    %22 = vector.extract_strided_slice %19 {offsets = [0, 32], sizes = [8, 32], strides = [1, 1]} : vector<8x64xf32> to vector<8x32xf32>
    %23 = arith.mulf %20, %3 : vector<8x32xf32>
    %24 = vector.extract_strided_slice %11 {offsets = [0, 64], sizes = [8, 32], strides = [1, 1]} : vector<8x96xf32> to vector<8x32xf32>
    %c0_11 = arith.constant 0 : index
    %c0_12 = arith.constant 0 : index
    %25 = vector.load %arg4[%c0_11, %c0_12] : memref<32x32xf32, #tpu.memory_space<vmem>>, vector<32x32xf32>
    %cst_13 = arith.constant dense<0.000000e+00> : vector<8x32xf32>
    %26 = tpu.matmul %23, %25, %cst_13 {dimension_numbers = #tpu.dot_dimension_numbers<[1], [0], [0], [1], [0, 0, 1, 1], [], []>} : vector<8x32xf32>, vector<32x32xf32>, vector<8x32xf32> -> vector<8x32xf32>
    %27 = arith.addf %24, %26 : vector<8x32xf32>
    %cst_14 = arith.constant 0.000000e+00 : f32
    %28 = vector.broadcast %cst_14 : f32 to vector<8x32xf32>
    %29 = arith.maximumf %27, %28 : vector<8x32xf32>
    %30 = arith.mulf %29, %22 : vector<8x32xf32>
    %31 = arith.mulf %21, %3 : vector<8x32xf32>
    %32 = arith.addf %30, %31 : vector<8x32xf32>
    %cst_15 = arith.constant 0.000000e+00 : f32
    %33 = vector.broadcast %cst_15 : f32 to vector<8x32xf32>
    %34 = arith.maximumf %32, %33 : vector<8x32xf32>
    %c0_16 = arith.constant 0 : index
    %c0_17 = arith.constant 0 : index
    %35 = vector.load %arg7[%c0_16, %c0_17] : memref<8x32xf32, #tpu.memory_space<vmem>>, vector<8x32xf32>
    tpu.vector_store %arg7[%c0_16, %c0_17], %34 {strides = array<i32>} : memref<8x32xf32, #tpu.memory_space<vmem>>, vector<8x32xf32>,
    %c0_18 = arith.constant 0 : index
    %c0_19 = arith.constant 0 : index
    %c0_20 = arith.constant 0 : index
    %36 = vector.load %arg6[%c0_18, %c0_19, %c0_20] : memref<1x8x32xf32, #tpu.memory_space<vmem>>, vector<1x8x32xf32>
    %37 = vector.shape_cast %36 : vector<1x8x32xf32> to vector<8x32xf32>
    %38 = vector.shape_cast %34 : vector<8x32xf32> to vector<1x8x32xf32>
    tpu.vector_store %arg6[%c0_18, %c0_19, %c0_20], %38 {strides = array<i32>} : memref<1x8x32xf32, #tpu.memory_space<vmem>>, vector<1x8x32xf32>,
    return
  }
  func.func @transform_0(%arg0: i32) -> (i32, i32, i32) {
    %c0_i32 = arith.constant 0 : i32
    %c0_i32_0 = arith.constant 0 : i32
    %c0_i32_1 = arith.constant 0 : i32
    return %arg0, %c0_i32, %c0_i32_0 : i32, i32, i32
  }
  func.func @transform_1(%arg0: i32) -> (i32, i32) {
    %c0_i32 = arith.constant 0 : i32
    %c0_i32_0 = arith.constant 0 : i32
    %c0_i32_1 = arith.constant 0 : i32
    return %c0_i32, %c0_i32_0 : i32, i32
  }
  func.func @transform_2(%arg0: i32) -> (i32, i32) {
    %c0_i32 = arith.constant 0 : i32
    %c0_i32_0 = arith.constant 0 : i32
    %c0_i32_1 = arith.constant 0 : i32
    return %c0_i32, %c0_i32_0 : i32, i32
  }
  func.func @transform_3(%arg0: i32) -> (i32, i32) {
    %c0_i32 = arith.constant 0 : i32
    %c0_i32_0 = arith.constant 0 : i32
    %c0_i32_1 = arith.constant 0 : i32
    return %c0_i32, %c0_i32_0 : i32, i32
  }
  func.func @transform_4(%arg0: i32) -> (i32, i32) {
    %c0_i32 = arith.constant 0 : i32
    %c0_i32_0 = arith.constant 0 : i32
    %c0_i32_1 = arith.constant 0 : i32
    return %c0_i32, %c0_i32_0 : i32, i32
  }
  func.func @transform_5(%arg0: i32) -> (i32, i32, i32) {
    %c0_i32 = arith.constant 0 : i32
    %c0_i32_0 = arith.constant 0 : i32
    %c0_i32_1 = arith.constant 0 : i32
    return %arg0, %c0_i32, %c0_i32_0 : i32, i32, i32
  }
}

</mosaic_0001>

<llo_original>
// kernel: tpu_custom_call.1
$region0: #{tpu_custom_call.1}
  #allocation0 [shape = 'u32[]', space=smem, size = 0x4, offset = 0x4, fixed_abs, tag = 'smem constant byte address 0x4 - core index']
  #allocation1 [shape = 'u32[144,128]{1,0:T(1,128)}', space=vmem, size = 0x12000, scoped, tag = 'internal scratch']
  #allocation2 [shape = 'f32[8,32]{1,0:T(8,128)}', space=vmem, size = 0x1000, scoped, tag = 'scratch operand']
  %s0 = inlined_call_operand.hbm [shape: f32[1,8,32], index: 0, kind: input, shape index: {}]
  %s1 = inlined_call_operand.hbm [shape: f32[8,32], index: 1, kind: input, shape index: {}]
  %s2 = inlined_call_operand.hbm [shape: f32[64,96], index: 2, kind: input, shape index: {}]
  %s3 = inlined_call_operand.hbm [shape: f32[32,32], index: 3, kind: input, shape index: {}]
  %s4 = inlined_call_operand.vmem [shape: f32[1,96], index: 4, kind: input, shape index: {}]
  %s5 = inlined_call_operand.hbm [shape: f32[1,8,32], index: 5, kind: output, shape index: {}]
  %s6 = sld [smem:[#allocation0]]
  $region50: #{tpu_custom_call.1} parent=0
    _
  %s8 = ssub.s32 1, %s6
  %s9 = scalar_select 0, %s8, %s6
  $region1: #{tpu_custom_call.1} parent=0
    #allocation3 [shape = 'u8[4096]{0}', space=vmem, size = 0x1000, scoped, tag = 'input window, operand 0, single buffered']
    #allocation4 [shape = 's32[1]{0}', space=sflag, size = 0x4, scoped, tag = 'scoped memory for tpu_custom_call.1']
    #allocation5 [shape = 's32[1]{0}', space=sflag, size = 0x4, scoped, tag = 'scoped memory for tpu_custom_call.1']
    #allocation6 [shape = 'u8[4096]{0}', space=vmem, size = 0x1000, scoped, tag = 'input window, operand 1, single buffered']
    #allocation7 [shape = 's32[1]{0}', space=sflag, size = 0x4, scoped, tag = 'scoped memory for tpu_custom_call.1']
    #allocation8 [shape = 'u8[32768]{0}', space=vmem, size = 0x8000, scoped, tag = 'input window, operand 2, single buffered']
    #allocation9 [shape = 'u8[16384]{0}', space=vmem, size = 0x4000, scoped, tag = 'input window, operand 3, single buffered']
    #allocation10 [shape = 's32[1]{0}', space=sflag, size = 0x4, scoped, tag = 'scoped memory for tpu_custom_call.1']
    #allocation11 [shape = 'u8[4096]{0}', space=vmem, size = 0x1000, scoped, tag = 'output window, operand 0, single buffered']
    %10 = vsyncpa [#allocation4], 0
    %11 = vsyncpa [#allocation7], 0
    %12 = vsyncpa [#allocation10], 0
    %13 = vsyncpa [#allocation5], 0
    // Predicated region
    $region2: #{tpu_custom_call.1} parent=1 // pred_check
      _
    $region3: #{tpu_custom_call.1} parent=1 // pred_check_branch
      %15 = sbr.rel (0) target = $region5
    $region4: #{tpu_custom_call.1} parent=1 // pred_region
      %s17 = ssub.s32 128, 128
      %18 = vsyncadd [#allocation4], %s17
      %s20 = sshll.u32 [#allocation3], 4
      %s21 = int_to_ptr.vmem [resolvable:$true] %s20
      %23 = dma.hbm_to_vmem [thread:$0]  %s0, 128, %s21, [#allocation4]
    $region5: #{tpu_custom_call.1} parent=1 // pred_fallthru
      _
    // Predicated region
    $region6: #{tpu_custom_call.1} parent=1 // pred_check
      _
    $region7: #{tpu_custom_call.1} parent=1 // pred_check_branch
      %25 = sbr.rel (0) target = $region9
    $region8: #{tpu_custom_call.1} parent=1 // pred_region
      %s27 = ssub.s32 128, 128
      %28 = vsyncadd [#allocation7], %s27
      %s30 = sshll.u32 [#allocation6], 4
      %s31 = int_to_ptr.vmem [resolvable:$true] %s30
      %33 = dma.hbm_to_vmem [thread:$0]  %s1, 128, %s31, [#allocation7]
    $region9: #{tpu_custom_call.1} parent=1 // pred_fallthru
      _
    // Predicated region
    $region10: #{tpu_custom_call.1} parent=1 // pred_check
      _
    $region11: #{tpu_custom_call.1} parent=1 // pred_check_branch
      %35 = sbr.rel (0) target = $region13
    $region12: #{tpu_custom_call.1} parent=1 // pred_region
      %s37 = ssub.s32 1024, 1024
      %38 = vsyncadd [#allocation7], %s37
      %s39 = sshll.u32 [#allocation8], 4
      %s40 = int_to_ptr.vmem [resolvable:$true] %s39
      %45 = dma.hbm_to_vmem [thread:$0]  %s2, 1024, %s40, [#allocation7], 128, 128, 8
    $region13: #{tpu_custom_call.1} parent=1 // pred_fallthru
      _
    // Predicated region
    $region14: #{tpu_custom_call.1} parent=1 // pred_check
      _
    $region15: #{tpu_custom_call.1} parent=1 // pred_check_branch
      %47 = sbr.rel (0) target = $region17
    $region16: #{tpu_custom_call.1} parent=1 // pred_region
      %s49 = ssub.s32 512, 512
      %50 = vsyncadd [#allocation10], %s49
      %s51 = sshll.u32 [#allocation9], 4
      %s52 = int_to_ptr.vmem [resolvable:$true] %s51
      %57 = dma.hbm_to_vmem [thread:$0]  %s3, 512, %s52, [#allocation10], 128, 128, 8
    $region17: #{tpu_custom_call.1} parent=1 // pred_fallthru
      _
    // Predicated region
    $region18: #{tpu_custom_call.1} parent=1 // pred_check
      _
    $region19: #{tpu_custom_call.1} parent=1 // pred_check_branch
      %59 = sbr.rel (0) target = $region21
    $region20: #{tpu_custom_call.1} parent=1 // pred_region
      _
    $region21: #{tpu_custom_call.1} parent=1 // pred_fallthru
      _
    // Predicated region
    $region22: #{tpu_custom_call.1} parent=1 // pred_check
      _
    $region23: #{tpu_custom_call.1} parent=1 // pred_check_branch
      %61 = sbr.rel (0) target = $region25
    $region24: #{tpu_custom_call.1} parent=1 // pred_region
      %62 = dma.done [#allocation4], 128
    $region25: #{tpu_custom_call.1} parent=1 // pred_fallthru
      _
    // Predicated region
    $region26: #{tpu_custom_call.1} parent=1 // pred_check
      _
    $region27: #{tpu_custom_call.1} parent=1 // pred_check_branch
      %64 = sbr.rel (0) target = $region29
    $region28: #{tpu_custom_call.1} parent=1 // pred_region
      %65 = dma.done [#allocation7], 128
    $region29: #{tpu_custom_call.1} parent=1 // pred_fallthru
      _
    // Predicated region
    $region30: #{tpu_custom_call.1} parent=1 // pred_check
      _
    $region31: #{tpu_custom_call.1} parent=1 // pred_check_branch
      %67 = sbr.rel (0) target = $region33
    $region32: #{tpu_custom_call.1} parent=1 // pred_region
      %68 = dma.done [#allocation7], 1024
    $region33: #{tpu_custom_call.1} parent=1 // pred_fallthru
      _
    // Predicated region
    $region34: #{tpu_custom_call.1} parent=1 // pred_check
      _
    $region35: #{tpu_custom_call.1} parent=1 // pred_check_branch
      %70 = sbr.rel (0) target = $region37
    $region36: #{tpu_custom_call.1} parent=1 // pred_region
      %71 = dma.done [#allocation10], 512
    $region37: #{tpu_custom_call.1} parent=1 // pred_fallthru
      _
    %p72 = scmp.eq.s32.totalorder 0, 0
    // Predicated region
    $region38: #{tpu_custom_call.1} parent=1 // pred_check
      %p73 = pneg %p72
    $region39: #{tpu_custom_call.1} parent=1 // pred_check_branch
      %75 = sbr.rel (%p73) target = $region41
    $region40: #{tpu_custom_call.1} parent=1 // pred_region
      %v76 = vld [vmem:[#allocation6] sm:$0xff]
      %vm77 = vcmask 261120
      %78 = vst.msk [vmem:[#allocation2] sm:$0xff] %vm77, %v76
    $region41: #{tpu_custom_call.1} parent=1 // pred_fallthru
      _
    %v79 = vld [vmem:[#allocation2] sm:$0xff]
    %v80 = vld [vmem:[#allocation3] sm:$0xff]
    %82 = vrot.lane.b32.xlu0 %v79, 32
    %v83 = vpop.permute.xlu0 %82
    %vm85 = vcmask 261120
    %v86 = vsel %vm85, %v80, %v83
    %v87 = vld [vmem:[#allocation8] sm:$0xff]
    %v88 = vld [vmem:[#allocation8 + $0x8] sm:$0xff]
    %v89 = vld [vmem:[#allocation8 + $0x10] sm:$0xff]
    %v90 = vld [vmem:[#allocation8 + $0x18] sm:$0xff]
    %v91 = vld [vmem:[#allocation8 + $0x20] sm:$0xff]
    %v92 = vld [vmem:[#allocation8 + $0x28] sm:$0xff]
    %v93 = vld [vmem:[#allocation8 + $0x30] sm:$0xff]
    %v94 = vld [vmem:[#allocation8 + $0x38] sm:$0xff]
    %v95 = vld [vmem:[%s4] sm:$0x1]
    %v97 = vlaneseq
    %v98 = vshrl.u32 %v97, 7
    %v99 = vsub.s32 0, %v98
    %v100 = vrot.slane %v95, %v99
    %vm102 = vcmask 523264
    %v104 = vsel %vm102, %v86, 0
    %106 = vmatprep.subr.mxu0 0.0
    %107 = vmatpush1.msra.mxu0 %v87
    %108 = vmatprep.subr.mxu0 0.0
    %109 = vmatpush1.msra.mxu0 %v88
    %110 = vmatprep.subr.mxu0 0.0
    %111 = vmatpush1.msra.mxu0 %v89
    %112 = vmatprep.subr.mxu0 0.0
    %113 = vmatpush1.msra.mxu0 %v90
    %114 = vmatprep.subr.mxu0 0.0
    %115 = vmatpush1.msra.mxu0 %v91
    %116 = vmatprep.subr.mxu0 0.0
    %117 = vmatpush1.msra.mxu0 %v92
    %118 = vmatprep.subr.mxu0 0.0
    %119 = vmatpush1.msra.mxu0 %v93
    %120 = vmatprep.subr.mxu0 0.0
    %121 = vmatpush1.msra.mxu0 %v94
    %122 = vmatprep.subr.mxu0 0.0
    %123 = vmatpush1.msra.mxu0 0.0
    %124 = vmatprep.subr.mxu0 0.0
    %125 = vmatpush1.msra.mxu0 0.0
    %126 = vmatprep.subr.mxu0 0.0
    %127 = vmatpush1.msra.mxu0 0.0
    %128 = vmatprep.subr.mxu0 0.0
    %129 = vmatpush1.msra.mxu0 0.0
    %130 = vmatprep.subr.mxu0 0.0
    %131 = vmatpush1.msra.mxu0 0.0
    %132 = vmatprep.subr.mxu0 0.0
    %133 = vmatpush1.msra.mxu0 0.0
    %134 = vmatprep.subr.mxu0 0.0
    %135 = vmatpush1.msra.mxu0 0.0
    %136 = vmatprep.subr.mxu0 0.0
    %137 = vmatpush1.msra.mxu0 0.0
    %138 = vmatprep.subr.mxu0 0.0
    %139 = vmatpush1.msra.mxu0 0.0
    %140 = vmatprep.subr.mxu0 0.0
    %141 = vmatpush1.msra.mxu0 0.0
    %142 = vmatprep.subr.mxu0 0.0
    %143 = vmatpush1.msra.mxu0 0.0
    %144 = vmatprep.subr.mxu0 0.0
    %145 = vmatpush1.msra.mxu0 0.0
    %146 = vmatprep.subr.mxu0 0.0
    %147 = vmatpush1.msra.mxu0 0.0
    %148 = vmatprep.subr.mxu0 0.0
    %149 = vmatpush1.msra.mxu0 0.0
    %150 = vmatprep.subr.mxu0 0.0
    %151 = vmatpush1.msra.mxu0 0.0
    %152 = vmatprep.subr.mxu0 0.0
    %153 = vmatpush1.msra.mxu0 0.0
    %154 = vmatprep.subr.mxu0 0.0
    %155 = vmatpush1.msra.mxu0 0.0
    %156 = vmatprep.subr.mxu0 0.0
    %157 = vmatpush1.msra.mxu0 0.0
    %158 = vmatprep.subr.mxu0 0.0
    %159 = vmatpush1.msra.mxu0 0.0
    %160 = vmatprep.subr.mxu0 0.0
    %161 = vmatpush1.msra.mxu0 0.0
    %162 = vmatprep.subr.mxu0 0.0
    %163 = vmatpush1.msra.mxu0 0.0
    %164 = vmatprep.subr.mxu0 0.0
    %165 = vmatpush1.msra.mxu0 0.0
    %166 = vmatprep.subr.mxu0 0.0
    %167 = vmatpush1.msra.mxu0 0.0
    %168 = vmatprep.subr.mxu0 0.0
    %169 = vmatpush1.msra.mxu0 0.0
    %170 = vmatprep.mubr.f32.mxu0 0.0
    %171 = vmatmul.mubr.f32.gmra.mrb[0].mxu0 %v104
    %v172 = vpop.f32.mrb[0].mxu0
    %v173 = vadd.f32 %v100, %v172
    %v174 = vpop.f32.mrb[0].mxu0
    %175 = vdwg.mxu0
    %v176 = vxor.u32 %v173, 2147483648
    %v177 = vmul.f32 %v176, 1.442695
    %v178 = vpow.pop %v177
    %v179 = vadd.f32 %v178, 1.0
    %v180 = vrcp.pop %v179
    %v181 = vmul.f32 1.0, %v180
    %v182 = vsub.f32 1.0, %v181
    %v183 = vmul.f32 %v182, %v79
    %v184 = vld [vmem:[#allocation9] sm:$0xff]
    %v185 = vld [vmem:[#allocation9 + $0x8] sm:$0xff]
    %v186 = vld [vmem:[#allocation9 + $0x10] sm:$0xff]
    %v187 = vld [vmem:[#allocation9 + $0x18] sm:$0xff]
    %v189 = vsel %vm85, %v183, 0
    %191 = vmatprep.subr.mxu0 0.0
    %192 = vmatpush1.msra.mxu0 %v184
    %193 = vmatprep.subr.mxu0 0.0
    %194 = vmatpush1.msra.mxu0 %v185
    %195 = vmatprep.subr.mxu0 0.0
    %196 = vmatpush1.msra.mxu0 %v186
    %197 = vmatprep.subr.mxu0 0.0
    %198 = vmatpush1.msra.mxu0 %v187
    %199 = vmatprep.subr.mxu0 0.0
    %200 = vmatpush1.msra.mxu0 0.0
    %201 = vmatprep.subr.mxu0 0.0
    %202 = vmatpush1.msra.mxu0 0.0
    %203 = vmatprep.subr.mxu0 0.0
    %204 = vmatpush1.msra.mxu0 0.0
    %205 = vmatprep.subr.mxu0 0.0
    %206 = vmatpush1.msra.mxu0 0.0
    %207 = vmatprep.subr.mxu0 0.0
    %208 = vmatpush1.msra.mxu0 0.0
    %209 = vmatprep.subr.mxu0 0.0
    %210 = vmatpush1.msra.mxu0 0.0
    %211 = vmatprep.subr.mxu0 0.0
    %212 = vmatpush1.msra.mxu0 0.0
    %213 = vmatprep.subr.mxu0 0.0
    %214 = vmatpush1.msra.mxu0 0.0
    %215 = vmatprep.subr.mxu0 0.0
    %216 = vmatpush1.msra.mxu0 0.0
    %217 = vmatprep.subr.mxu0 0.0
    %218 = vmatpush1.msra.mxu0 0.0
    %219 = vmatprep.subr.mxu0 0.0
    %220 = vmatpush1.msra.mxu0 0.0
    %221 = vmatprep.subr.mxu0 0.0
    %222 = vmatpush1.msra.mxu0 0.0
    %223 = vmatprep.subr.mxu0 0.0
    %224 = vmatpush1.msra.mxu0 0.0
    %225 = vmatprep.subr.mxu0 0.0
    %226 = vmatpush1.msra.mxu0 0.0
    %227 = vmatprep.subr.mxu0 0.0
    %228 = vmatpush1.msra.mxu0 0.0
    %229 = vmatprep.subr.mxu0 0.0
    %230 = vmatpush1.msra.mxu0 0.0
    %231 = vmatprep.subr.mxu0 0.0
    %232 = vmatpush1.msra.mxu0 0.0
    %233 = vmatprep.subr.mxu0 0.0
    %234 = vmatpush1.msra.mxu0 0.0
    %235 = vmatprep.subr.mxu0 0.0
    %236 = vmatpush1.msra.mxu0 0.0
    %237 = vmatprep.subr.mxu0 0.0
    %238 = vmatpush1.msra.mxu0 0.0
    %239 = vmatprep.subr.mxu0 0.0
    %240 = vmatpush1.msra.mxu0 0.0
    %241 = vmatprep.subr.mxu0 0.0
    %242 = vmatpush1.msra.mxu0 0.0
    %243 = vmatprep.subr.mxu0 0.0
    %244 = vmatpush1.msra.mxu0 0.0
    %245 = vmatprep.subr.mxu0 0.0
    %246 = vmatpush1.msra.mxu0 0.0
    %247 = vmatprep.subr.mxu0 0.0
    %248 = vmatpush1.msra.mxu0 0.0
    %249 = vmatprep.subr.mxu0 0.0
    %250 = vmatpush1.msra.mxu0 0.0
    %251 = vmatprep.subr.mxu0 0.0
    %252 = vmatpush1.msra.mxu0 0.0
    %253 = vmatprep.subr.mxu0 0.0
    %254 = vmatpush1.msra.mxu0 0.0
    %255 = vmatprep.mubr.f32.mxu0 0.0
    %256 = vmatmul.mubr.f32.gmra.mrb[0].mxu0 %v189
    %v257 = vpop.f32.mrb[0].mxu0
    %v258 = vadd.f32 0.0, %v257
    %v259 = vpop.f32.mrb[0].mxu0
    %260 = vdwg.mxu0
    %262 = vrot.lane.b32.xlu0 %v258, 64
    %v263 = vpop.permute.xlu0 %262
    %v265 = vadd.f32 %v173, %v263
    %v266 = vmax.f32 %v265, 0.0
    %268 = vrot.lane.b32.xlu0 %v182, 32
    %v269 = vpop.permute.xlu0 %268
    %v271 = vmul.f32 %v266, %v269
    %v272 = vmul.f32 %v181, %v83
    %274 = vrot.lane.b32.xlu0 %v272, 32
    %v275 = vpop.permute.xlu0 %274
    %v277 = vadd.f32 %v271, %v275
    %v278 = vmax.f32 %v277, 0.0
    %280 = vrot.lane.b32.xlu0 %v278, 64
    %v281 = vpop.permute.xlu0 %280
    %283 = vst.msk [vmem:[#allocation2] sm:$0xff] %vm85, %v281
    %284 = vst.msk [vmem:[#allocation11] sm:$0xff] %vm85, %v281
    // Predicated region
    $region42: #{tpu_custom_call.1} parent=1 // pred_check
      _
    $region43: #{tpu_custom_call.1} parent=1 // pred_check_branch
      %286 = sbr.rel (0) target = $region45
    $region44: #{tpu_custom_call.1} parent=1 // pred_region
      %s288 = ssub.s32 128, 128
      %289 = vsyncadd [#allocation5], %s288
      %s291 = sshll.u32 [#allocation11], 4
      %s292 = int_to_ptr.vmem [resolvable:$true] %s291
      %294 = dma.vmem_to_hbm [thread:$0]  %s292, 128, %s5, [#allocation5]
    $region45: #{tpu_custom_call.1} parent=1 // pred_fallthru
      _
    // Predicated region
    $region46: #{tpu_custom_call.1} parent=1 // pred_check
      _
    $region47: #{tpu_custom_call.1} parent=1 // pred_check_branch
      %296 = sbr.rel (0) target = $region49
    $region48: #{tpu_custom_call.1} parent=1 // pred_region
      %297 = dma.done [#allocation5], 128
    $region49: #{tpu_custom_call.1} parent=1 // pred_fallthru
      _
    %298 = vsyncpa [#allocation4], 1
    %299 = vsyncpa [#allocation7], 1
    %300 = vsyncpa [#allocation10], 1
    %301 = vsyncpa [#allocation5], 1

</llo_original>
